<compile_context>
chip_gen: v7x
topology: tpu7x:2x2x1
jax: 0.10.0
libtpu: 0.0.40
codegen_flags: <defaults>
</compile_context>

<pallas_src>
import functools

import jax
import jax.numpy as jnp
from jax.experimental import pallas as pl
from jax.experimental.pallas import tpu as pltpu


def _downconv_kernel(w_ref, x_ref, b_ref, o_ref):
    # w_ref: (C_out, K)   flattened conv weight, VMEM-resident across steps
    # x_ref: (K, tm)      im2col patch tile (K on sublanes, tm lane-dense)
    # b_ref: (C_out, 1)   bias (f32)
    # o_ref: (C_out, tm)  lane-dense output tile
    acc = jnp.dot(w_ref[...], x_ref[...], preferred_element_type=jnp.float32)
    acc = acc + b_ref[...]
    o_ref[...] = jnp.maximum(acc, 0.0).astype(o_ref.dtype)


def _round_up(x, m):
    return ((x + m - 1) // m) * m


def _pick_tm(M, K, C_out, in_itemsize, out_itemsize, *,
             max_tm=2048, vmem_budget=16 * 1024 * 1024):
    """Largest 128-multiple lane tile that fits VMEM; prefers divisors of M."""
    cands = [c for c in (2048, 1024, 512, 256, 128) if c <= max_tm]

    def fits(t):
        vmem = (2 * K * t * in_itemsize          # x tile, double-buffered
                + 2 * C_out * t * out_itemsize   # out tile, double-buffered
                + C_out * K * in_itemsize        # resident weight
                + C_out * 4)                     # resident bias
        return vmem <= vmem_budget

    cands = [c for c in cands if fits(c)] or [128]
    # Prefer exact divisors with >= 2 grid steps (no pad copy, megacore-friendly).
    for c in cands:
        if M % c == 0 and M // c >= 2:
            return c
    for c in cands:
        if M % c == 0:
            return c
    # Padding needed: pick the largest tile not exceeding M to limit waste.
    for c in cands:
        if c <= M:
            return c
    return cands[-1]


def downsampling_conv_block(x, weight, bias, *, stride=2, compute_dtype=None,
                            max_tm=2048):
    """ReLU(Conv3d(x, weight, bias, kernel=stride, stride=stride, padding=0)).

    x:      (N, C_in, D, H, W)
    weight: (C_out, C_in, s, s, s)   (PyTorch layout)
    bias:   (C_out,)
    returns (N, C_out, D//s, H//s, W//s)
    """
    s = stride
    N, C_in, D, H, W = x.shape
    C_out = weight.shape[0]
    assert D % s == 0 and H % s == 0 and W % s == 0
    Do, Ho, Wo = D // s, H // s, W // s
    K = C_in * s * s * s
    M = N * Do * Ho * Wo

    out_dtype = x.dtype
    if compute_dtype is None:
        compute_dtype = x.dtype
    in_itemsize = jnp.dtype(compute_dtype).itemsize
    out_itemsize = jnp.dtype(out_dtype).itemsize

    # --- glue: non-overlapping s^3 patches -> (K, M) patch matrix -----------
    # x -> (N, C_in, Do, s, Ho, s, Wo, s) -> (C_in, s, s, s, N, Do, Ho, Wo)
    xp = x.reshape(N, C_in, Do, s, Ho, s, Wo, s)
    xp = jnp.transpose(xp, (1, 3, 5, 7, 0, 2, 4, 6))
    xp = xp.reshape(K, M).astype(compute_dtype)

    # PyTorch weight (C_out, C_in, s, s, s) flattens directly to (C_out, K)
    # (same (cin, kd, kh, kw) ordering as the patch rows) -- no transpose.
    w = weight.reshape(C_out, K).astype(compute_dtype)
    b = bias.reshape(C_out, 1).astype(jnp.float32)

    tm = _pick_tm(M, K, C_out, in_itemsize, out_itemsize, max_tm=max_tm)
    M_pad = _round_up(M, tm)
    if M_pad != M:
        xp = jnp.pad(xp, ((0, 0), (0, M_pad - M)))

    grid = (M_pad // tm,)
    cost = pl.CostEstimate(
        flops=2 * C_out * K * M_pad,
        transcendentals=0,
        bytes_accessed=(K * M_pad * in_itemsize
                        + C_out * K * in_itemsize
                        + C_out * M_pad * out_itemsize
                        + C_out * 4),
    )

    out = pl.pallas_call(
        _downconv_kernel,
        out_shape=jax.ShapeDtypeStruct((C_out, M_pad), out_dtype),
        grid_spec=pltpu.PrefetchScalarGridSpec(
            num_scalar_prefetch=0,
            grid=grid,
            in_specs=[
                pl.BlockSpec((C_out, K), lambda i: (0, 0)),   # weight (resident)
                pl.BlockSpec((K, tm), lambda i: (0, i)),      # patch tile
                pl.BlockSpec((C_out, 1), lambda i: (0, 0)),   # bias (resident)
            ],
            out_specs=pl.BlockSpec((C_out, tm), lambda i: (0, i)),
        ),
        compiler_params=pltpu.CompilerParams(
            dimension_semantics=("parallel",)),
        cost_estimate=cost,
    )(w, xp, b)

    out = out[:, :M]  # drop lane padding (padded cols hold bias/ReLU garbage)
    # (C_out, M) -> (C_out, N, Do, Ho, Wo) -> (N, C_out, Do, Ho, Wo);
    # only leading axes move, the minor (Ho, Wo) layout is untouched.
    out = out.reshape(C_out, N, Do, Ho, Wo)
    out = jnp.transpose(out, (1, 0, 2, 3, 4))
    return out


def _reference(x, weight, bias, stride=2, compute_dtype=None):
    """Pure-JAX reference (lax.conv_general_dilated, NCDHW / OIDHW)."""
    if compute_dtype is not None:
        x = x.astype(compute_dtype)
        weight = weight.astype(compute_dtype)
    y = jax.lax.conv_general_dilated(
        x, weight,
        window_strides=(stride, stride, stride),
        padding="VALID",
        dimension_numbers=("NCDHW", "OIDHW", "NCDHW"),
        preferred_element_type=jnp.float32,
    )
    y = y + bias.reshape(1, -1, 1, 1, 1).astype(jnp.float32)
    return jnp.maximum(y, 0.0)


if __name__ == "__main__":
    key = jax.random.PRNGKey(0)
    k_x, k_w, k_b, k_x2, k_w2, k_b2 = jax.random.split(key, 6)
    stride = 2

    # --- case 1: batch=2, C_in=4 -> C_out=8, spatial 16^3 ------------------
    # stride-2 downsample -> 8^3 output, M = 2*8^3 = 1024 -> tm=512, 2 steps.
    N, C_in, C_out, S = 2, 4, 8, 16
    x = jax.random.normal(k_x, (N, C_in, S, S, S), dtype=jnp.float32)
    fan_in = C_in * stride ** 3
    weight = jax.random.normal(
        k_w, (C_out, C_in, stride, stride, stride), dtype=jnp.float32
    ) * (1.0 / jnp.sqrt(fan_in))
    bias = jax.random.normal(k_b, (C_out,), dtype=jnp.float32) * 0.01
    expected_shape = (N, C_out, S // stride, S // stride, S // stride)

    fn = jax.jit(functools.partial(downsampling_conv_block, stride=stride))
    y = fn(x, weight, bias)
    jax.block_until_ready(y)
    y_ref = _reference(x, weight, bias, stride=stride)
    assert y.shape == expected_shape, y.shape
    assert jnp.allclose(y, y_ref, atol=1e-4, rtol=1e-4), float(
        jnp.max(jnp.abs(y - y_ref)))

    # --- case 1b: bf16-input path (v6e/v7x: halve HBM reads) ---------------
    fn_bf16 = jax.jit(functools.partial(
        downsampling_conv_block, stride=stride, compute_dtype=jnp.bfloat16))
    y16 = fn_bf16(x, weight, bias)
    jax.block_until_ready(y16)
    y16_ref = _reference(x, weight, bias, stride=stride,
                         compute_dtype=jnp.bfloat16)
    assert y16.shape == expected_shape, y16.shape
    assert jnp.allclose(y16, y16_ref, atol=2e-2, rtol=2e-2), float(
        jnp.max(jnp.abs(y16 - y16_ref)))

    # --- case 2: odd channel counts / non-128-divisible M (padding path) ---
    N2, C_in2, C_out2 = 1, 3, 5
    D2, H2, W2 = 6, 10, 12          # -> Do,Ho,Wo = 3,5,6 ; M = 90 (< 128)
    x2 = jax.random.normal(k_x2, (N2, C_in2, D2, H2, W2), dtype=jnp.float32)
    w2 = jax.random.normal(
        k_w2, (C_out2, C_in2, stride, stride, stride), dtype=jnp.float32
    ) * (1.0 / jnp.sqrt(C_in2 * stride ** 3))
    b2 = jax.random.normal(k_b2, (C_out2,), dtype=jnp.float32) * 0.01
    y2 = jax.jit(functools.partial(downsampling_conv_block, stride=stride))(
        x2, w2, b2)
    jax.block_until_ready(y2)
    y2_ref = _reference(x2, w2, b2, stride=stride)
    assert y2.shape == (N2, C_out2, D2 // 2, H2 // 2, W2 // 2), y2.shape
    assert jnp.allclose(y2, y2_ref, atol=1e-4, rtol=1e-4), float(
        jnp.max(jnp.abs(y2 - y2_ref)))

    print("KERNEL_OK")
</pallas_src>

<mosaic_0001>
module attributes {stable_mosaic.version = 11 : i64} {
  func.func @_downconv_kernel(%arg0: i32, %arg1: memref<8x32xf32, #tpu.memory_space<vmem>>, %arg2: memref<32x512xf32, #tpu.memory_space<vmem>>, %arg3: memref<8x1xf32, #tpu.memory_space<vmem>>, %arg4: memref<8x512xf32, #tpu.memory_space<vmem>>) attributes {dimension_semantics = [#tpu.dimension_semantics<parallel>], iteration_bounds = array<i64: 2>, scalar_prefetch = 0 : i64, scratch_operands = 0 : i64, tpu.core_type = #tpu.core_type<tc>, window_params = [{pipeline_mode = #tpu.pipeline_mode<synchronous>, transform_indices = @transform_0, window_bounds = array<i64: 8, 32>}, {transform_indices = @transform_1, window_bounds = array<i64: 32, 512>}, {pipeline_mode = #tpu.pipeline_mode<synchronous>, transform_indices = @transform_2, window_bounds = array<i64: 8, 1>}, {transform_indices = @transform_3, window_bounds = array<i64: 8, 512>}]} {
    %c0 = arith.constant 0 : index
    %c0_0 = arith.constant 0 : index
    %0 = vector.load %arg1[%c0, %c0_0] : memref<8x32xf32, #tpu.memory_space<vmem>>, vector<8x32xf32>
    %c0_1 = arith.constant 0 : index
    %c0_2 = arith.constant 0 : index
    %1 = vector.load %arg2[%c0_1, %c0_2] : memref<32x512xf32, #tpu.memory_space<vmem>>, vector<32x512xf32>
    %cst = arith.constant dense<0.000000e+00> : vector<8x512xf32>
    %2 = tpu.matmul %0, %1, %cst {dimension_numbers = #tpu.dot_dimension_numbers<[1], [0], [0], [1], [0, 0, 1, 1], [], []>} : vector<8x32xf32>, vector<32x512xf32>, vector<8x512xf32> -> vector<8x512xf32>
    %c0_3 = arith.constant 0 : index
    %c0_4 = arith.constant 0 : index
    %3 = vector.load %arg3[%c0_3, %c0_4] : memref<8x1xf32, #tpu.memory_space<vmem>>, vector<8x1xf32>
    %4 = vector.broadcast %3 : vector<8x1xf32> to vector<8x512xf32>
    %5 = arith.addf %2, %4 : vector<8x512xf32>
    %cst_5 = arith.constant 0.000000e+00 : f32
    %6 = vector.broadcast %cst_5 : f32 to vector<8x512xf32>
    %7 = arith.maximumf %5, %6 : vector<8x512xf32>
    %c0_6 = arith.constant 0 : index
    %c0_7 = arith.constant 0 : index
    %8 = vector.load %arg4[%c0_6, %c0_7] : memref<8x512xf32, #tpu.memory_space<vmem>>, vector<8x512xf32>
    tpu.vector_store %arg4[%c0_6, %c0_7], %7 {strides = array<i32>} : memref<8x512xf32, #tpu.memory_space<vmem>>, vector<8x512xf32>,
    return
  }
  func.func @transform_0(%arg0: i32) -> (i32, i32) {
    %c0_i32 = arith.constant 0 : i32
    %c0_i32_0 = arith.constant 0 : i32
    %c0_i32_1 = arith.constant 0 : i32
    return %c0_i32, %c0_i32_0 : i32, i32
  }
  func.func @transform_1(%arg0: i32) -> (i32, i32) {
    %c0_i32 = arith.constant 0 : i32
    %c0_i32_0 = arith.constant 0 : i32
    return %c0_i32, %arg0 : i32, i32
  }
  func.func @transform_2(%arg0: i32) -> (i32, i32) {
    %c0_i32 = arith.constant 0 : i32
    %c0_i32_0 = arith.constant 0 : i32
    %c0_i32_1 = arith.constant 0 : i32
    return %c0_i32, %c0_i32_0 : i32, i32
  }
  func.func @transform_3(%arg0: i32) -> (i32, i32) {
    %c0_i32 = arith.constant 0 : i32
    %c0_i32_0 = arith.constant 0 : i32
    return %c0_i32, %arg0 : i32, i32
  }
}

</mosaic_0001>

<llo_original>
// kernel: downsampling_conv_block.1
$region0: #{downsampling_conv_block.1}
  #allocation0 [shape = 'u32[]', space=smem, size = 0x4, offset = 0x4, fixed_abs, tag = 'smem constant byte address 0x4 - core index']
  #allocation1 [shape = 'u32[144,128]{1,0:T(1,128)}', space=vmem, size = 0x12000, scoped, tag = 'internal scratch']
  %s0 = inlined_call_operand.vmem [shape: f32[8,32], index: 0, kind: input, shape index: {}]
  %s1 = inlined_call_operand.vmem [shape: f32[32,1024], index: 1, kind: input, shape index: {}]
  %s2 = inlined_call_operand.vmem [shape: f32[8,1], index: 2, kind: input, shape index: {}]
  %s3 = inlined_call_operand.vmem [shape: f32[8,1024], index: 3, kind: output, shape index: {}]
  %s4 = sld [smem:[#allocation0]]
  $region68: #{downsampling_conv_block.1} parent=0
    _
  %s6 = ssub.s32 1, %s4
  %s7 = scalar_select 0, %s6, %s4
  $region1: #{downsampling_conv_block.1} parent=0
    #allocation2 [shape = 'u8[131072]{0}', space=vmem, size = 0x20000, scoped, tag = 'input window, operand 1']
    loop: start=0, step=1, limit=4
    $region2: #{downsampling_conv_block.1} parent=1 // loop_pre_header
      _
    $region3: #{downsampling_conv_block.1} parent=1 // loop_header
      %s9 = sphi 0, %s13
      %p10 = scmp.ge.s32.totalorder %s9, 4
      %s17 = sphi 0, %s17
      %s19 = sphi 0, %s17
      %s20 = sphi 0, %s19
      %s34 = sphi 0, %s20
      %s40 = sphi 0, %s42
      %s43 = sphi 0, %s40
      %s44 = sphi 0, %s43
      %s60 = sphi 0, %s44
      %s64 = sphi 0, %s64
      %s66 = sphi 0, %s64
      %s67 = sphi 0, %s66
      %s81 = sphi 0, %s67
      %s87 = sphi 0, %s89
      %s90 = sphi 0, %s87
      %s91 = sphi 0, %s90
      %s107 = sphi 0, %s91
    $region4: #{downsampling_conv_block.1} parent=1 // loop_header_branch
      %12 = sbr.rel (%p10) target = $region8
    $region5: #{downsampling_conv_block.1} parent=1 // loop_body
      %s14 = ssub.s32 %s9, 1
      %s15 = ssub.s32 %s9, 2
      %s16 = sadd.s32 %s9, 1
      %s18 = sadd.s32 %s17, 1
      %p21 = scmp.eq.s32.totalorder %s9, 1
      %p22 = scmp.ne.s32.totalorder %s17, %s19
      %p23 = scmp.eq.s32.totalorder %s9, 0
      %p24 = por %p22, %p23
      %p25 = scmp.ne.s32.totalorder %s17, %s19
      %p26 = scmp.eq.s32.totalorder %s14, 1
      %p27 = por %p25, %p26
      %p28 = scmp.ne.s32.totalorder %s19, %s20
      %p29 = scmp.eq.s32.totalorder %s14, 0
      %p30 = por %p28, %p29
      %p31 = scmp.ne.s32.totalorder %s19, %s20
      %p32 = scmp.eq.s32.totalorder %s15, 1
      %p33 = por %p31, %p32
      %p35 = scmp.ne.s32.totalorder %s20, %s34
      %p36 = scmp.eq.s32.totalorder %s15, 0
      %p37 = por %p35, %p36
      %s38 = ssub.s32 %s9, %s16
      %p39 = scmp.eq.s32.totalorder %s38, 0
      %s41 = sadd.s32 %s40, 1
      %s42 = scalar_select %p39, %s40, %s41
      %p45 = pneg %p39
      %p46 = scmp.eq.s32.totalorder %s9, 1
      %p47 = por %p45, %p46
      %p48 = scmp.ne.s32.totalorder %s40, %s43
      %p49 = scmp.eq.s32.totalorder %s9, 0
      %p50 = por %p48, %p49
      %p51 = scmp.ne.s32.totalorder %s40, %s43
      %p52 = scmp.eq.s32.totalorder %s14, 1
      %p53 = por %p51, %p52
      %p54 = scmp.ne.s32.totalorder %s43, %s44
      %p55 = scmp.eq.s32.totalorder %s14, 0
      %p56 = por %p54, %p55
      %p57 = scmp.ne.s32.totalorder %s43, %s44
      %p58 = scmp.eq.s32.totalorder %s15, 1
      %p59 = por %p57, %p58
      %p61 = scmp.ne.s32.totalorder %s44, %s60
      %p62 = scmp.eq.s32.totalorder %s15, 0
      %p63 = por %p61, %p62
      %s65 = sadd.s32 %s64, 1
      %p68 = scmp.eq.s32.totalorder %s9, 1
      %p69 = scmp.ne.s32.totalorder %s64, %s66
      %p70 = scmp.eq.s32.totalorder %s9, 0
      %p71 = por %p69, %p70
      %p72 = scmp.ne.s32.totalorder %s64, %s66
      %p73 = scmp.eq.s32.totalorder %s14, 1
      %p74 = por %p72, %p73
      %p75 = scmp.ne.s32.totalorder %s66, %s67
      %p76 = scmp.eq.s32.totalorder %s14, 0
      %p77 = por %p75, %p76
      %p78 = scmp.ne.s32.totalorder %s66, %s67
      %p79 = scmp.eq.s32.totalorder %s15, 1
      %p80 = por %p78, %p79
      %p82 = scmp.ne.s32.totalorder %s67, %s81
      %p83 = scmp.eq.s32.totalorder %s15, 0
      %p84 = por %p82, %p83
      %s85 = ssub.s32 %s9, %s16
      %p86 = scmp.eq.s32.totalorder %s85, 0
      %s88 = sadd.s32 %s87, 1
      %s89 = scalar_select %p86, %s87, %s88
      %p92 = pneg %p86
      %p93 = scmp.eq.s32.totalorder %s9, 1
      %p94 = por %p92, %p93
      %p95 = scmp.ne.s32.totalorder %s87, %s90
      %p96 = scmp.eq.s32.totalorder %s9, 0
      %p97 = por %p95, %p96
      %p98 = scmp.ne.s32.totalorder %s87, %s90
      %p99 = scmp.eq.s32.totalorder %s14, 1
      %p100 = por %p98, %p99
      %p101 = scmp.ne.s32.totalorder %s90, %s91
      %p102 = scmp.eq.s32.totalorder %s14, 0
      %p103 = por %p101, %p102
      %p104 = scmp.ne.s32.totalorder %s90, %s91
      %p105 = scmp.eq.s32.totalorder %s15, 1
      %p106 = por %p104, %p105
      %p108 = scmp.ne.s32.totalorder %s91, %s107
      %p109 = scmp.eq.s32.totalorder %s15, 0
      %p110 = por %p108, %p109
      %p111 = scmp.le.s32.totalorder 1, %s9
      %p112 = scmp.lt.s32.totalorder %s9, 3
      %p113 = pnand %p111, %p112
      %p114 = pneg %p113
      // Predicated region
      $region9: #{downsampling_conv_block.1} parent=5 // pred_check
        _
      $region10: #{downsampling_conv_block.1} parent=5 // pred_check_branch
        %116 = sbr.rel (%p113) target = $region12
      $region11: #{downsampling_conv_block.1} parent=5 // pred_region
        %s117 = ssub.s32 %s9, 1
        // Predicated region
        $region13: #{downsampling_conv_block.1} parent=11 // pred_check
          %p118 = pneg %p30
        $region14: #{downsampling_conv_block.1} parent=11 // pred_check_branch
          %120 = sbr.rel (%p118) target = $region16
        $region15: #{downsampling_conv_block.1} parent=11 // pred_region
          _
        $region16: #{downsampling_conv_block.1} parent=11 // pred_fallthru
          _
        // Predicated region
        $region17: #{downsampling_conv_block.1} parent=11 // pred_check
          %p121 = pneg %p77
        $region18: #{downsampling_conv_block.1} parent=11 // pred_check_branch
          %123 = sbr.rel (%p121) target = $region20
        $region19: #{downsampling_conv_block.1} parent=11 // pred_region
          _
        $region20: #{downsampling_conv_block.1} parent=11 // pred_fallthru
          _
      $region12: #{downsampling_conv_block.1} parent=5 // pred_fallthru
        _
      %p124 = scmp.lt.s32.totalorder %s9, 2
      // Predicated region
      $region21: #{downsampling_conv_block.1} parent=5 // pred_check
        %p125 = pneg %p124
      $region22: #{downsampling_conv_block.1} parent=5 // pred_check_branch
        %127 = sbr.rel (%p125) target = $region24
      $region23: #{downsampling_conv_block.1} parent=5 // pred_region
        // Predicated region
        $region25: #{downsampling_conv_block.1} parent=23 // pred_check
          %p128 = pneg %p50
        $region26: #{downsampling_conv_block.1} parent=23 // pred_check_branch
          %130 = sbr.rel (%p128) target = $region28
        $region27: #{downsampling_conv_block.1} parent=23 // pred_region
          %s131 = sand.u32 %s40, 1
          %s132 = sand.u32 %s40, 1
          %s133 = smul.addr %s132, 128
          %s134 = scalar_lea.vmem [#allocation2], %s133
          %s135 = smul.u32 4, %s9
          %s136 = smul.addr %s135, 8
          %s137 = scalar_lea.vmem %s1, %s136
          // Predicated region
          $region29: #{downsampling_conv_block.1} parent=27 // pred_check
            _
          $region30: #{downsampling_conv_block.1} parent=27 // pred_check_branch
            %139 = sbr.rel (0) target = $region32
          $region31: #{downsampling_conv_block.1} parent=27 // pred_region
            // Predicated region
            $region33: #{downsampling_conv_block.1} parent=31 // pred_check
              _
            $region34: #{downsampling_conv_block.1} parent=31 // pred_check_branch
              %141 = sbr.rel (0) target = $region36
            $region35: #{downsampling_conv_block.1} parent=31 // pred_region
              loop: start=0, step=1, limit=1
              $region37: #{downsampling_conv_block.1} parent=35 // loop_pre_header
                _
              $region38: #{downsampling_conv_block.1} parent=35 // loop_header
                %s143 = sphi 0, %s147
                %p144 = scmp.ge.s32.totalorder %s143, 1
                %s148 = sphi %s137, %s137
                %s149 = sphi %s134, %s134
              $region39: #{downsampling_conv_block.1} parent=35 // loop_header_branch
                %146 = sbr.rel (%p144) target = $region43
              $region40: #{downsampling_conv_block.1} parent=35 // loop_body
                %v150 = vld [vmem:[%s148] sm:$0xff]
                %151 = vst [vmem:[%s149] sm:$0xff] %v150
                %v152 = vld [vmem:[%s148 + $0x8] sm:$0xff]
                %153 = vst [vmem:[%s149 + $0x8] sm:$0xff] %v152
                %v154 = vld [vmem:[%s148 + $0x10] sm:$0xff]
                %155 = vst [vmem:[%s149 + $0x10] sm:$0xff] %v154
                %v156 = vld [vmem:[%s148 + $0x18] sm:$0xff]
                %157 = vst [vmem:[%s149 + $0x18] sm:$0xff] %v156
                %v158 = vld [vmem:[%s148 + $0x40] sm:$0xff]
                %159 = vst [vmem:[%s149 + $0x20] sm:$0xff] %v158
                %v160 = vld [vmem:[%s148 + $0x48] sm:$0xff]
                %161 = vst [vmem:[%s149 + $0x28] sm:$0xff] %v160
                %v162 = vld [vmem:[%s148 + $0x50] sm:$0xff]
                %163 = vst [vmem:[%s149 + $0x30] sm:$0xff] %v162
                %v164 = vld [vmem:[%s148 + $0x58] sm:$0xff]
                %165 = vst [vmem:[%s149 + $0x38] sm:$0xff] %v164
                %v166 = vld [vmem:[%s148 + $0x80] sm:$0xff]
                %167 = vst [vmem:[%s149 + $0x40] sm:$0xff] %v166
                %v168 = vld [vmem:[%s148 + $0x88] sm:$0xff]
                %169 = vst [vmem:[%s149 + $0x48] sm:$0xff] %v168
                %v170 = vld [vmem:[%s148 + $0x90] sm:$0xff]
                %171 = vst [vmem:[%s149 + $0x50] sm:$0xff] %v170
                %v172 = vld [vmem:[%s148 + $0x98] sm:$0xff]
                %173 = vst [vmem:[%s149 + $0x58] sm:$0xff] %v172
                %v174 = vld [vmem:[%s148 + $0xc0] sm:$0xff]
                %175 = vst [vmem:[%s149 + $0x60] sm:$0xff] %v174
                %v176 = vld [vmem:[%s148 + $0xc8] sm:$0xff]
                %177 = vst [vmem:[%s149 + $0x68] sm:$0xff] %v176
                %v178 = vld [vmem:[%s148 + $0xd0] sm:$0xff]
                %179 = vst [vmem:[%s149 + $0x70] sm:$0xff] %v178
                %v180 = vld [vmem:[%s148 + $0xd8] sm:$0xff]
                %181 = vst [vmem:[%s149 + $0x78] sm:$0xff] %v180
              $region41: #{downsampling_conv_block.1} parent=35 // loop_footer
                %s147 = sadd.s32 1, %s143
              $region42: #{downsampling_conv_block.1} parent=35 // loop_footer_branch
                %142 = sbr.rel target = $region38
              $region43: #{downsampling_conv_block.1} parent=35 // loop_exit
                _
            $region36: #{downsampling_conv_block.1} parent=31 // pred_fallthru
              _
            // Predicated region
            $region44: #{downsampling_conv_block.1} parent=31 // pred_check
              _
            $region45: #{downsampling_conv_block.1} parent=31 // pred_check_branch
              %183 = sbr.rel target = $region47
            $region46: #{downsampling_conv_block.1} parent=31 // pred_region
              _
            $region47: #{downsampling_conv_block.1} parent=31 // pred_fallthru
              _
          $region32: #{downsampling_conv_block.1} parent=27 // pred_fallthru
            _
          %184 = vnop
        $region28: #{downsampling_conv_block.1} parent=23 // pred_fallthru
          _
      $region24: #{downsampling_conv_block.1} parent=5 // pred_fallthru
        _
      %p185 = scmp.le.s32.totalorder 1, %s9
      %p186 = scmp.lt.s32.totalorder %s9, 3
      %p187 = pnand %p185, %p186
      %p188 = pneg %p187
      // Predicated region
      $region48: #{downsampling_conv_block.1} parent=5 // pred_check
        _
      $region49: #{downsampling_conv_block.1} parent=5 // pred_check_branch
        %190 = sbr.rel (%p187) target = $region51
      $region50: #{downsampling_conv_block.1} parent=5 // pred_region
        %s191 = ssub.s32 %s9, 1
        %s192 = sand.u32 %s43, 1
        %s193 = sand.u32 %s43, 1
        %s194 = smul.addr %s193, 128
        %s195 = scalar_lea.vmem [#allocation2], %s194
        // Predicated region
        $region52: #{downsampling_conv_block.1} parent=50 // pred_check
          %p196 = pneg %p56
        $region53: #{downsampling_conv_block.1} parent=50 // pred_check_branch
          %198 = sbr.rel (%p196) target = $region55
        $region54: #{downsampling_conv_block.1} parent=50 // pred_region
          _
        $region55: #{downsampling_conv_block.1} parent=50 // pred_fallthru
          _
        %p199 = pneg %p30
        %p200 = pneg %p27
        %s201 = sand.u32 %s43, 1
        %s202 = sand.u32 %s43, 1
        %s203 = smul.addr %s202, 128
        %s204 = scalar_lea.vmem [#allocation2], %s203
        %p205 = pneg %p56
        %p206 = pneg %p53
        %p207 = pneg %p77
        %p208 = pneg %p74
        %p209 = pneg %p103
        %p210 = pneg %p100
        %s211 = smul.u32 4, %s14
        %p212 = scmp.lt.s32.totalorder %s211, 7
        %s213 = scalar_select %p212, %s211, 7
        %s214 = smul.addr %s213, 8
        %s215 = scalar_lea.vmem %s3, %s214
        %s216 = smul.u32 4, %s14
        %s217 = smul.u32 4, %s14
        %p218 = scmp.lt.s32.totalorder %s217, 7
        %s219 = scalar_select %p218, %s217, 7
        %s220 = smul.addr %s219, 8
        %s221 = scalar_lea.vmem %s3, %s220
        %s222 = smul.u32 4, %s14
        %v223 = vld [vmem:[%s0] sm:$0xff]
        %v224 = vld [vmem:[%s195] sm:$0xff]
        %v225 = vld [vmem:[%s195 + $0x8] sm:$0xff]
        %v226 = vld [vmem:[%s195 + $0x10] sm:$0xff]
        %v227 = vld [vmem:[%s195 + $0x18] sm:$0xff]
        %v228 = vld [vmem:[%s195 + $0x20] sm:$0xff]
        %v229 = vld [vmem:[%s195 + $0x28] sm:$0xff]
        %v230 = vld [vmem:[%s195 + $0x30] sm:$0xff]
        %v231 = vld [vmem:[%s195 + $0x38] sm:$0xff]
        %v232 = vld [vmem:[%s195 + $0x40] sm:$0xff]
        %v233 = vld [vmem:[%s195 + $0x48] sm:$0xff]
        %v234 = vld [vmem:[%s195 + $0x50] sm:$0xff]
        %v235 = vld [vmem:[%s195 + $0x58] sm:$0xff]
        %v236 = vld [vmem:[%s195 + $0x60] sm:$0xff]
        %v237 = vld [vmem:[%s195 + $0x68] sm:$0xff]
        %v238 = vld [vmem:[%s195 + $0x70] sm:$0xff]
        %v239 = vld [vmem:[%s195 + $0x78] sm:$0xff]
        %v240 = vld [vmem:[%s2] sm:$0xff]
        %242 = vset.pattern.permute.xlu0 0
        %243 = vperm.xlu0 %242, %v240
        %v244 = vpop.permute.xlu0 %243
        %vm246 = vcmask 261120
        %v248 = vsel %vm246, %v223, 0
        %250 = vmatprep.subr.mxu0 %v225
        %251 = vmatpush1.msra.mxu0 %v224
        %252 = vmatprep.subr.mxu0 %v229
        %253 = vmatpush1.msra.mxu0 %v228
        %254 = vmatprep.subr.mxu0 %v233
        %255 = vmatpush1.msra.mxu0 %v232
        %256 = vmatprep.subr.mxu0 %v237
        %257 = vmatpush1.msra.mxu0 %v236
        %258 = vmatprep.subr.mxu0 0.0
        %259 = vmatpush1.msra.mxu0 0.0
        %260 = vmatprep.subr.mxu0 0.0
        %261 = vmatpush1.msra.mxu0 0.0
        %262 = vmatprep.subr.mxu0 0.0
        %263 = vmatpush1.msra.mxu0 0.0
        %264 = vmatprep.subr.mxu0 0.0
        %265 = vmatpush1.msra.mxu0 0.0
        %266 = vmatprep.subr.mxu0 0.0
        %267 = vmatpush1.msra.mxu0 0.0
        %268 = vmatprep.subr.mxu0 0.0
        %269 = vmatpush1.msra.mxu0 0.0
        %270 = vmatprep.subr.mxu0 0.0
        %271 = vmatpush1.msra.mxu0 0.0
        %272 = vmatprep.subr.mxu0 0.0
        %273 = vmatpush1.msra.mxu0 0.0
        %274 = vmatprep.subr.mxu0 0.0
        %275 = vmatpush1.msra.mxu0 0.0
        %276 = vmatprep.subr.mxu0 0.0
        %277 = vmatpush1.msra.mxu0 0.0
        %278 = vmatprep.subr.mxu0 0.0
        %279 = vmatpush1.msra.mxu0 0.0
        %280 = vmatprep.subr.mxu0 0.0
        %281 = vmatpush1.msra.mxu0 0.0
        %282 = vmatprep.subr.mxu0 0.0
        %283 = vmatpush1.msra.mxu0 0.0
        %284 = vmatprep.subr.mxu0 0.0
        %285 = vmatpush1.msra.mxu0 0.0
        %286 = vmatprep.subr.mxu0 0.0
        %287 = vmatpush1.msra.mxu0 0.0
        %288 = vmatprep.subr.mxu0 0.0
        %289 = vmatpush1.msra.mxu0 0.0
        %290 = vmatprep.subr.mxu0 0.0
        %291 = vmatpush1.msra.mxu0 0.0
        %292 = vmatprep.subr.mxu0 0.0
        %293 = vmatpush1.msra.mxu0 0.0
        %294 = vmatprep.subr.mxu0 0.0
        %295 = vmatpush1.msra.mxu0 0.0
        %296 = vmatprep.subr.mxu0 0.0
        %297 = vmatpush1.msra.mxu0 0.0
        %298 = vmatprep.subr.mxu0 0.0
        %299 = vmatpush1.msra.mxu0 0.0
        %300 = vmatprep.subr.mxu0 0.0
        %301 = vmatpush1.msra.mxu0 0.0
        %302 = vmatprep.subr.mxu0 0.0
        %303 = vmatpush1.msra.mxu0 0.0
        %304 = vmatprep.subr.mxu0 0.0
        %305 = vmatpush1.msra.mxu0 0.0
        %306 = vmatprep.subr.mxu0 0.0
        %307 = vmatpush1.msra.mxu0 0.0
        %308 = vmatprep.subr.mxu0 0.0
        %309 = vmatpush1.msra.mxu0 0.0
        %310 = vmatprep.subr.mxu0 0.0
        %311 = vmatpush1.msra.mxu0 0.0
        %312 = vmatprep.subr.mxu0 0.0
        %313 = vmatpush1.msra.mxu0 0.0
        %314 = vmatprep.mubr.f32.mxu0 0.0
        %315 = vmatmul.mubr.f32.gmra.mrb[0].mxu0 %v248
        %v316 = vpop.f32.mrb[0].mxu0
        %v317 = vadd.f32 %v244, %v316
        %v318 = vpop.f32.mrb[0].mxu0
        %v319 = vadd.f32 %v244, %v318
        %320 = vdwg.mxu0
        %321 = vmatprep.subr.mxu0 %v227
        %322 = vmatpush1.msra.mxu0 %v226
        %323 = vmatprep.subr.mxu0 %v231
        %324 = vmatpush1.msra.mxu0 %v230
        %325 = vmatprep.subr.mxu0 %v235
        %326 = vmatpush1.msra.mxu0 %v234
        %327 = vmatprep.subr.mxu0 %v239
        %328 = vmatpush1.msra.mxu0 %v238
        %329 = vmatprep.subr.mxu0 0.0
        %330 = vmatpush1.msra.mxu0 0.0
        %331 = vmatprep.subr.mxu0 0.0
        %332 = vmatpush1.msra.mxu0 0.0
        %333 = vmatprep.subr.mxu0 0.0
        %334 = vmatpush1.msra.mxu0 0.0
        %335 = vmatprep.subr.mxu0 0.0
        %336 = vmatpush1.msra.mxu0 0.0
        %337 = vmatprep.subr.mxu0 0.0
        %338 = vmatpush1.msra.mxu0 0.0
        %339 = vmatprep.subr.mxu0 0.0
        %340 = vmatpush1.msra.mxu0 0.0
        %341 = vmatprep.subr.mxu0 0.0
        %342 = vmatpush1.msra.mxu0 0.0
        %343 = vmatprep.subr.mxu0 0.0
        %344 = vmatpush1.msra.mxu0 0.0
        %345 = vmatprep.subr.mxu0 0.0
        %346 = vmatpush1.msra.mxu0 0.0
        %347 = vmatprep.subr.mxu0 0.0
        %348 = vmatpush1.msra.mxu0 0.0
        %349 = vmatprep.subr.mxu0 0.0
        %350 = vmatpush1.msra.mxu0 0.0
        %351 = vmatprep.subr.mxu0 0.0
        %352 = vmatpush1.msra.mxu0 0.0
        %353 = vmatprep.subr.mxu0 0.0
        %354 = vmatpush1.msra.mxu0 0.0
        %355 = vmatprep.subr.mxu0 0.0
        %356 = vmatpush1.msra.mxu0 0.0
        %357 = vmatprep.subr.mxu0 0.0
        %358 = vmatpush1.msra.mxu0 0.0
        %359 = vmatprep.subr.mxu0 0.0
        %360 = vmatpush1.msra.mxu0 0.0
        %361 = vmatprep.subr.mxu0 0.0
        %362 = vmatpush1.msra.mxu0 0.0
        %363 = vmatprep.subr.mxu0 0.0
        %364 = vmatpush1.msra.mxu0 0.0
        %365 = vmatprep.subr.mxu0 0.0
        %366 = vmatpush1.msra.mxu0 0.0
        %367 = vmatprep.subr.mxu0 0.0
        %368 = vmatpush1.msra.mxu0 0.0
        %369 = vmatprep.subr.mxu0 0.0
        %370 = vmatpush1.msra.mxu0 0.0
        %371 = vmatprep.subr.mxu0 0.0
        %372 = vmatpush1.msra.mxu0 0.0
        %373 = vmatprep.subr.mxu0 0.0
        %374 = vmatpush1.msra.mxu0 0.0
        %375 = vmatprep.subr.mxu0 0.0
        %376 = vmatpush1.msra.mxu0 0.0
        %377 = vmatprep.subr.mxu0 0.0
        %378 = vmatpush1.msra.mxu0 0.0
        %379 = vmatprep.subr.mxu0 0.0
        %380 = vmatpush1.msra.mxu0 0.0
        %381 = vmatprep.subr.mxu0 0.0
        %382 = vmatpush1.msra.mxu0 0.0
        %383 = vmatprep.subr.mxu0 0.0
        %384 = vmatpush1.msra.mxu0 0.0
        %385 = vmatprep.mubr.f32.mxu0 0.0
        %386 = vmatmul.mubr.f32.gmra.mrb[0].mxu0 %v248
        %v387 = vpop.f32.mrb[0].mxu0
        %v388 = vadd.f32 %v244, %v387
        %v389 = vpop.f32.mrb[0].mxu0
        %v390 = vadd.f32 %v244, %v389
        %391 = vdwg.mxu0
        %v392 = vmax.f32 %v317, 0.0
        %v393 = vmax.f32 %v319, 0.0
        %v394 = vmax.f32 %v388, 0.0
        %v395 = vmax.f32 %v390, 0.0
        %396 = vst [vmem:[%s221] sm:$0xff] %v392
        %397 = vst [vmem:[%s221 + $0x8] sm:$0xff] %v393
        %398 = vst [vmem:[%s221 + $0x10] sm:$0xff] %v394
        %399 = vst [vmem:[%s221 + $0x18] sm:$0xff] %v395
        %s400 = smul.u32 4, %s14
        %p401 = scmp.lt.s32.totalorder %s400, 7
        %s402 = scalar_select %p401, %s400, 7
        %s403 = smul.addr %s402, 8
        %s404 = scalar_lea.vmem %s3, %s403
        // Predicated region
        $region56: #{downsampling_conv_block.1} parent=50 // pred_check
          %p405 = pneg %p100
        $region57: #{downsampling_conv_block.1} parent=50 // pred_check_branch
          %407 = sbr.rel (%p405) target = $region59
        $region58: #{downsampling_conv_block.1} parent=50 // pred_region
          %s408 = smul.u32 4, %s14
        $region59: #{downsampling_conv_block.1} parent=50 // pred_fallthru
          _
      $region51: #{downsampling_conv_block.1} parent=5 // pred_fallthru
        _
      %p409 = scmp.le.s32.totalorder 2, %s9
      // Predicated region
      $region60: #{downsampling_conv_block.1} parent=5 // pred_check
        %p410 = pneg %p409
      $region61: #{downsampling_conv_block.1} parent=5 // pred_check_branch
        %412 = sbr.rel (%p410) target = $region63
      $region62: #{downsampling_conv_block.1} parent=5 // pred_region
        %s413 = ssub.s32 %s9, 2
        // Predicated region
        $region64: #{downsampling_conv_block.1} parent=62 // pred_check
          %p414 = pneg %p106
        $region65: #{downsampling_conv_block.1} parent=62 // pred_check_branch
          %416 = sbr.rel (%p414) target = $region67
        $region66: #{downsampling_conv_block.1} parent=62 // pred_region
          %s417 = smul.u32 4, %s15
          %p418 = scmp.lt.s32.totalorder %s417, 7
          %s419 = scalar_select %p418, %s417, 7
          %s420 = smul.addr %s419, 8
          %s421 = scalar_lea.vmem %s3, %s420
        $region67: #{downsampling_conv_block.1} parent=62 // pred_fallthru
          _
      $region63: #{downsampling_conv_block.1} parent=5 // pred_fallthru
        _
    $region6: #{downsampling_conv_block.1} parent=1 // loop_footer
      %s13 = sadd.s32 1, %s9
    $region7: #{downsampling_conv_block.1} parent=1 // loop_footer_branch
      %8 = sbr.rel target = $region3
    $region8: #{downsampling_conv_block.1} parent=1 // loop_exit
      _

</llo_original>
